<compile_context>
chip_gen: v5e
topology: v5e:2x2
jax: 0.10.0
libtpu: 0.0.40
codegen_flags: <defaults>
</compile_context>

<pallas_src>
import jax
import jax.numpy as jnp
from jax.experimental import pallas as pl
from jax.experimental.pallas import tpu as pltpu

IN_FEATURES = 2
HIDDEN = 2
CLASSES = 2
N_PARAMS = 18          # 3 layers x (4 weights + 2 biases)

LANES = 512            # lane width of every block (multiple of 128)
MAX_BLOCK_ROWS = 512   # sublane rows per block (multiple of 8) -> <=2 MiB/operand
ROW_STRIP = 8          # rows per inner-loop step (keeps temporaries in vregs)

# Flat parameter layout (float32):
#   [0:4]   w1 (out, in) row-major   [4:6]   b1
#   [6:10]  w2                        [10:12] b2
#   [12:16] w3                        [16:18] b3


def bayes_net_kernel(p_ref, x_ref, out_ref):
    """Fused 3-layer MLP + log_softmax on a (2, r_blk, LANES) feature-major block.

    p_ref  : SMEM (18,) f32 -- packed weights/biases (scalars).
    x_ref  : VMEM (2, r_blk, LANES) f32 -- x[f, r, l] = feature f of a sample.
    out_ref: VMEM (2, r_blk, LANES) f32 -- per-class log_softmax outputs.
    """
    r_blk = x_ref.shape[1]
    assert r_blk % ROW_STRIP == 0

    # Hoist the 18 scalars out of the strip loop (SMEM -> scalar regs).
    w = [p_ref[i] for i in range(N_PARAMS)]

    def strip(s, carry):
        r0 = pl.multiple_of(s * ROW_STRIP, ROW_STRIP)
        rows = pl.ds(r0, ROW_STRIP)

        x0 = x_ref[0, rows, :]          # (ROW_STRIP, LANES) dense slab
        x1 = x_ref[1, rows, :]

        # Layer 1: linear + relu (scalar-weight FMAs on the VPU).
        h10 = jnp.maximum(w[0] * x0 + w[1] * x1 + w[4], 0.0)
        h11 = jnp.maximum(w[2] * x0 + w[3] * x1 + w[5], 0.0)
        # Layer 2: linear + relu.
        h20 = jnp.maximum(w[6] * h10 + w[7] * h11 + w[10], 0.0)
        h21 = jnp.maximum(w[8] * h10 + w[9] * h11 + w[11], 0.0)
        # Layer 3: linear.
        z0 = w[12] * h20 + w[13] * h21 + w[16]
        z1 = w[14] * h20 + w[15] * h21 + w[17]

        # log_softmax over the 2 classes, one exp + one log per element (EUP):
        #   lse = max(z0, z1) + log(1 + exp(-|z0 - z1|))
        m = jnp.maximum(z0, z1)
        lse = m + jnp.log(1.0 + jnp.exp(-jnp.abs(z0 - z1)))
        out_ref[0, rows, :] = z0 - lse
        out_ref[1, rows, :] = z1 - lse
        return carry

    jax.lax.fori_loop(0, r_blk // ROW_STRIP, strip, 0)


@jax.jit
def _bayes_forward_impl(x, flat_params):
    """Jitted forward: layout plumbing fuses around a single pallas_call."""
    x2d = x.astype(jnp.float32).reshape(-1, IN_FEATURES)
    B = x2d.shape[0]

    rows = pl.cdiv(B, LANES)                                       # samples/LANES
    r_blk = min(MAX_BLOCK_ROWS, pl.cdiv(rows, ROW_STRIP) * ROW_STRIP)
    n_blocks = pl.cdiv(rows, r_blk)
    r_tot = n_blocks * r_blk
    Bp = r_tot * LANES

    # Feature-major, sublane/lane-dense: (2, r_tot, LANES).  Single-pass pad,
    # transpose+reshape fuse under jit.
    xt = jnp.pad(x2d, ((0, Bp - B), (0, 0))).T.reshape(IN_FEATURES, r_tot, LANES)

    out_t = pl.pallas_call(
        bayes_net_kernel,
        out_shape=jax.ShapeDtypeStruct((CLASSES, r_tot, LANES), jnp.float32),
        grid=(n_blocks,),
        in_specs=[
            pl.BlockSpec(memory_space=pltpu.MemorySpace.SMEM),               # 18 scalars
            pl.BlockSpec((IN_FEATURES, r_blk, LANES), lambda i: (0, i, 0)),  # x block
        ],
        out_specs=pl.BlockSpec((CLASSES, r_blk, LANES), lambda i: (0, i, 0)),
        compiler_params=pltpu.CompilerParams(
            dimension_semantics=("parallel",)),
    )(flat_params, xt)

    # Back to [B, CLASSES]; padded tail columns are sliced off.
    return out_t.reshape(CLASSES, Bp).T[:B]


def pack_mu_params(params):
    """Eval-mode (sample=False) flat parameter vector: the mu's."""
    return jnp.concatenate([
        params["w1_mu"].reshape(-1), params["b1_mu"],
        params["w2_mu"].reshape(-1), params["b2_mu"],
        params["w3_mu"].reshape(-1), params["b3_mu"],
    ]).astype(jnp.float32)


def sample_flat_params(params, key):
    """sample=True path of BayesianLinear: w = mu + log1p(exp(rho)) * eps."""
    names = ["w1", "b1", "w2", "b2", "w3", "b3"]
    keys = jax.random.split(key, len(names))
    parts = []
    for k, name in zip(keys, names):
        mu = params[name + "_mu"]
        sigma = jnp.log1p(jnp.exp(params[name + "_rho"]))
        eps = jax.random.normal(k, mu.shape, mu.dtype)
        parts.append((mu + sigma * eps).reshape(-1))
    return jnp.concatenate(parts).astype(jnp.float32)


def bayesian_network_forward(x, params, *, sample=False, key=None):
    flat = sample_flat_params(params, key) if sample else pack_mu_params(params)
    return _bayes_forward_impl(x, flat)


def init_params(key):
    """Mirror BayesianLinear init: mu ~ U(-0.2, 0.2), rho ~ U(-5, -4)."""
    shapes = {"w1": (HIDDEN, IN_FEATURES), "b1": (HIDDEN,),
              "w2": (HIDDEN, HIDDEN), "b2": (HIDDEN,),
              "w3": (CLASSES, HIDDEN), "b3": (CLASSES,)}
    keys = jax.random.split(key, 2 * len(shapes))
    params = {}
    for i, (name, shp) in enumerate(shapes.items()):
        params[name + "_mu"] = jax.random.uniform(keys[2 * i], shp, jnp.float32, -0.2, 0.2)
        params[name + "_rho"] = jax.random.uniform(keys[2 * i + 1], shp, jnp.float32, -5.0, -4.0)
    return params


def reference_forward(x, flat_p):
    """Pure-JAX reference of the forward pass for a given flat weight vector."""
    x2d = x.astype(jnp.float32).reshape(-1, IN_FEATURES)
    w1 = flat_p[0:4].reshape(HIDDEN, IN_FEATURES); b1 = flat_p[4:6]
    w2 = flat_p[6:10].reshape(HIDDEN, HIDDEN); b2 = flat_p[10:12]
    w3 = flat_p[12:16].reshape(CLASSES, HIDDEN); b3 = flat_p[16:18]
    h1 = jax.nn.relu(x2d @ w1.T + b1)
    h2 = jax.nn.relu(h1 @ w2.T + b2)
    return jax.nn.log_softmax(h2 @ w3.T + b3, axis=1)


if __name__ == "__main__":
    key = jax.random.PRNGKey(0)
    pkey, xkey, x2key, skey = jax.random.split(key, 4)
    params = init_params(pkey)
    flat_mu = pack_mu_params(params)

    # Eval-mode forward (sample=False => mu weights), small batch.
    x = jax.random.normal(xkey, (8, IN_FEATURES), jnp.float32)
    out = jax.block_until_ready(bayesian_network_forward(x, params))
    ref = reference_forward(x, flat_mu)
    assert out.shape == (8, CLASSES)
    assert jnp.allclose(out, ref, atol=1e-5, rtol=1e-5)

    # Ragged batch exercising padding + the in-kernel strip loop (2 strips).
    x2 = jax.random.normal(x2key, (5000, IN_FEATURES), jnp.float32)
    out2 = jax.block_until_ready(bayesian_network_forward(x2, params))
    assert jnp.allclose(out2, reference_forward(x2, flat_mu), atol=1e-5, rtol=1e-5)

    # sample=True path: Bayesian weight sampling on 18 scalars, same kernel.
    flat_s = sample_flat_params(params, skey)
    out_s = jax.block_until_ready(_bayes_forward_impl(x, flat_s))
    assert jnp.allclose(out_s, reference_forward(x, flat_s), atol=1e-5, rtol=1e-5)

    print("KERNEL_OK")
</pallas_src>

<mosaic_0001>
module attributes {stable_mosaic.version = 11 : i64} {
  func.func @bayes_net_kernel(%arg0: i32, %arg1: memref<18xf32, #tpu.memory_space<smem>>, %arg2: memref<2x8x512xf32, #tpu.memory_space<vmem>>, %arg3: memref<2x8x512xf32, #tpu.memory_space<vmem>>) attributes {dimension_semantics = [#tpu.dimension_semantics<parallel>], iteration_bounds = array<i64: 1>, scalar_prefetch = 0 : i64, scratch_operands = 0 : i64, tpu.core_type = #tpu.core_type<tc>, window_params = [{transform_indices = @transform_0, window_bounds = array<i64: 18>}, {transform_indices = @transform_1, window_bounds = array<i64: 2, 8, 512>}, {transform_indices = @transform_2, window_bounds = array<i64: 2, 8, 512>}]} {
    %c0 = arith.constant 0 : index
    %0 = memref.load %arg1[%c0] : memref<18xf32, #tpu.memory_space<smem>>
    %c1 = arith.constant 1 : index
    %1 = memref.load %arg1[%c1] : memref<18xf32, #tpu.memory_space<smem>>
    %c2 = arith.constant 2 : index
    %2 = memref.load %arg1[%c2] : memref<18xf32, #tpu.memory_space<smem>>
    %c3 = arith.constant 3 : index
    %3 = memref.load %arg1[%c3] : memref<18xf32, #tpu.memory_space<smem>>
    %c4 = arith.constant 4 : index
    %4 = memref.load %arg1[%c4] : memref<18xf32, #tpu.memory_space<smem>>
    %c5 = arith.constant 5 : index
    %5 = memref.load %arg1[%c5] : memref<18xf32, #tpu.memory_space<smem>>
    %c6 = arith.constant 6 : index
    %6 = memref.load %arg1[%c6] : memref<18xf32, #tpu.memory_space<smem>>
    %c7 = arith.constant 7 : index
    %7 = memref.load %arg1[%c7] : memref<18xf32, #tpu.memory_space<smem>>
    %c8 = arith.constant 8 : index
    %8 = memref.load %arg1[%c8] : memref<18xf32, #tpu.memory_space<smem>>
    %c9 = arith.constant 9 : index
    %9 = memref.load %arg1[%c9] : memref<18xf32, #tpu.memory_space<smem>>
    %c10 = arith.constant 10 : index
    %10 = memref.load %arg1[%c10] : memref<18xf32, #tpu.memory_space<smem>>
    %c11 = arith.constant 11 : index
    %11 = memref.load %arg1[%c11] : memref<18xf32, #tpu.memory_space<smem>>
    %c12 = arith.constant 12 : index
    %12 = memref.load %arg1[%c12] : memref<18xf32, #tpu.memory_space<smem>>
    %c13 = arith.constant 13 : index
    %13 = memref.load %arg1[%c13] : memref<18xf32, #tpu.memory_space<smem>>
    %c14 = arith.constant 14 : index
    %14 = memref.load %arg1[%c14] : memref<18xf32, #tpu.memory_space<smem>>
    %c15 = arith.constant 15 : index
    %15 = memref.load %arg1[%c15] : memref<18xf32, #tpu.memory_space<smem>>
    %c16 = arith.constant 16 : index
    %16 = memref.load %arg1[%c16] : memref<18xf32, #tpu.memory_space<smem>>
    %c17 = arith.constant 17 : index
    %17 = memref.load %arg1[%c17] : memref<18xf32, #tpu.memory_space<smem>>
    %c0_i32 = arith.constant 0 : i32
    %c8_i32 = arith.constant 8 : i32
    %18 = arith.muli %c0_i32, %c8_i32 : i32
    %19 = tpu.assume_multiple %18, 8 : i32
    %c0_0 = arith.constant 0 : index
    %20 = arith.index_cast %19 : i32 to index
    %c0_1 = arith.constant 0 : index
    %21 = vector.load %arg2[%c0_0, %20, %c0_1] : memref<2x8x512xf32, #tpu.memory_space<vmem>>, vector<1x8x512xf32>
    %22 = vector.shape_cast %21 : vector<1x8x512xf32> to vector<8x512xf32>
    %c1_2 = arith.constant 1 : index
    %23 = arith.index_cast %19 : i32 to index
    %c0_3 = arith.constant 0 : index
    %24 = vector.load %arg2[%c1_2, %23, %c0_3] : memref<2x8x512xf32, #tpu.memory_space<vmem>>, vector<1x8x512xf32>
    %25 = vector.shape_cast %24 : vector<1x8x512xf32> to vector<8x512xf32>
    %26 = vector.broadcast %0 : f32 to vector<8x512xf32>
    %27 = arith.mulf %26, %22 : vector<8x512xf32>
    %28 = vector.broadcast %1 : f32 to vector<8x512xf32>
    %29 = arith.mulf %28, %25 : vector<8x512xf32>
    %30 = arith.addf %27, %29 : vector<8x512xf32>
    %31 = vector.broadcast %4 : f32 to vector<8x512xf32>
    %32 = arith.addf %30, %31 : vector<8x512xf32>
    %cst = arith.constant 0.000000e+00 : f32
    %33 = vector.broadcast %cst : f32 to vector<8x512xf32>
    %34 = arith.maximumf %32, %33 : vector<8x512xf32>
    %35 = vector.broadcast %2 : f32 to vector<8x512xf32>
    %36 = arith.mulf %35, %22 : vector<8x512xf32>
    %37 = vector.broadcast %3 : f32 to vector<8x512xf32>
    %38 = arith.mulf %37, %25 : vector<8x512xf32>
    %39 = arith.addf %36, %38 : vector<8x512xf32>
    %40 = vector.broadcast %5 : f32 to vector<8x512xf32>
    %41 = arith.addf %39, %40 : vector<8x512xf32>
    %cst_4 = arith.constant 0.000000e+00 : f32
    %42 = vector.broadcast %cst_4 : f32 to vector<8x512xf32>
    %43 = arith.maximumf %41, %42 : vector<8x512xf32>
    %44 = vector.broadcast %6 : f32 to vector<8x512xf32>
    %45 = arith.mulf %44, %34 : vector<8x512xf32>
    %46 = vector.broadcast %7 : f32 to vector<8x512xf32>
    %47 = arith.mulf %46, %43 : vector<8x512xf32>
    %48 = arith.addf %45, %47 : vector<8x512xf32>
    %49 = vector.broadcast %10 : f32 to vector<8x512xf32>
    %50 = arith.addf %48, %49 : vector<8x512xf32>
    %cst_5 = arith.constant 0.000000e+00 : f32
    %51 = vector.broadcast %cst_5 : f32 to vector<8x512xf32>
    %52 = arith.maximumf %50, %51 : vector<8x512xf32>
    %53 = vector.broadcast %8 : f32 to vector<8x512xf32>
    %54 = arith.mulf %53, %34 : vector<8x512xf32>
    %55 = vector.broadcast %9 : f32 to vector<8x512xf32>
    %56 = arith.mulf %55, %43 : vector<8x512xf32>
    %57 = arith.addf %54, %56 : vector<8x512xf32>
    %58 = vector.broadcast %11 : f32 to vector<8x512xf32>
    %59 = arith.addf %57, %58 : vector<8x512xf32>
    %cst_6 = arith.constant 0.000000e+00 : f32
    %60 = vector.broadcast %cst_6 : f32 to vector<8x512xf32>
    %61 = arith.maximumf %59, %60 : vector<8x512xf32>
    %62 = vector.broadcast %12 : f32 to vector<8x512xf32>
    %63 = arith.mulf %62, %52 : vector<8x512xf32>
    %64 = vector.broadcast %13 : f32 to vector<8x512xf32>
    %65 = arith.mulf %64, %61 : vector<8x512xf32>
    %66 = arith.addf %63, %65 : vector<8x512xf32>
    %67 = vector.broadcast %16 : f32 to vector<8x512xf32>
    %68 = arith.addf %66, %67 : vector<8x512xf32>
    %69 = vector.broadcast %14 : f32 to vector<8x512xf32>
    %70 = arith.mulf %69, %52 : vector<8x512xf32>
    %71 = vector.broadcast %15 : f32 to vector<8x512xf32>
    %72 = arith.mulf %71, %61 : vector<8x512xf32>
    %73 = arith.addf %70, %72 : vector<8x512xf32>
    %74 = vector.broadcast %17 : f32 to vector<8x512xf32>
    %75 = arith.addf %73, %74 : vector<8x512xf32>
    %76 = arith.maximumf %68, %75 : vector<8x512xf32>
    %77 = arith.subf %68, %75 : vector<8x512xf32>
    %78 = math.absf %77 : vector<8x512xf32>
    %cst_7 = arith.constant 0.000000e+00 : f32
    %79 = vector.broadcast %cst_7 : f32 to vector<8x512xf32>
    %80 = arith.subf %79, %78 : vector<8x512xf32>
    %81 = math.exp %80 : vector<8x512xf32>
    %cst_8 = arith.constant 1.000000e+00 : f32
    %82 = vector.broadcast %cst_8 : f32 to vector<8x512xf32>
    %83 = arith.addf %82, %81 : vector<8x512xf32>
    %84 = math.log %83 : vector<8x512xf32>
    %85 = arith.addf %76, %84 : vector<8x512xf32>
    %86 = arith.subf %68, %85 : vector<8x512xf32>
    %c0_9 = arith.constant 0 : index
    %87 = arith.index_cast %19 : i32 to index
    %c0_10 = arith.constant 0 : index
    %88 = vector.load %arg3[%c0_9, %87, %c0_10] : memref<2x8x512xf32, #tpu.memory_space<vmem>>, vector<1x8x512xf32>
    %89 = vector.shape_cast %88 : vector<1x8x512xf32> to vector<8x512xf32>
    %90 = vector.shape_cast %86 : vector<8x512xf32> to vector<1x8x512xf32>
    tpu.vector_store %arg3[%c0_9, %87, %c0_10], %90 {strides = array<i32>} : memref<2x8x512xf32, #tpu.memory_space<vmem>>, vector<1x8x512xf32>,
    %91 = arith.subf %75, %85 : vector<8x512xf32>
    %c1_11 = arith.constant 1 : index
    %92 = arith.index_cast %19 : i32 to index
    %c0_12 = arith.constant 0 : index
    %93 = vector.load %arg3[%c1_11, %92, %c0_12] : memref<2x8x512xf32, #tpu.memory_space<vmem>>, vector<1x8x512xf32>
    %94 = vector.shape_cast %93 : vector<1x8x512xf32> to vector<8x512xf32>
    %95 = vector.shape_cast %91 : vector<8x512xf32> to vector<1x8x512xf32>
    tpu.vector_store %arg3[%c1_11, %92, %c0_12], %95 {strides = array<i32>} : memref<2x8x512xf32, #tpu.memory_space<vmem>>, vector<1x8x512xf32>,
    %c1_i32 = arith.constant 1 : i32
    return
  }
  func.func @transform_0(%arg0: i32) -> i32 {
    %c0_i32 = arith.constant 0 : i32
    %c0_i32_0 = arith.constant 0 : i32
    return %c0_i32 : i32
  }
  func.func @transform_1(%arg0: i32) -> (i32, i32, i32) {
    %c0_i32 = arith.constant 0 : i32
    %c0_i32_0 = arith.constant 0 : i32
    %c0_i32_1 = arith.constant 0 : i32
    return %c0_i32, %arg0, %c0_i32_0 : i32, i32, i32
  }
  func.func @transform_2(%arg0: i32) -> (i32, i32, i32) {
    %c0_i32 = arith.constant 0 : i32
    %c0_i32_0 = arith.constant 0 : i32
    %c0_i32_1 = arith.constant 0 : i32
    return %c0_i32, %arg0, %c0_i32_0 : i32, i32, i32
  }
}

</mosaic_0001>

<llo_original>
// kernel: _bayes_forward_impl.1
$region0: #{_bayes_forward_impl.1}
  #allocation0 [shape = 'u32[]', space=smem, size = 0x4, offset = 0x4, fixed_abs, tag = 'smem constant byte address 0x4 - core index']
  #allocation1 [shape = 'u32[72,128]{1,0:T(1,128)}', space=vmem, size = 0x9000, scoped, tag = 'internal scratch']
  %s0 = inlined_call_operand.vmem [shape: f32[18], index: 0, kind: input, shape index: {}]
  %s1 = inlined_call_operand.vmem [shape: f32[2,8,512], index: 1, kind: input, shape index: {}]
  %s2 = inlined_call_operand.vmem [shape: f32[2,8,512], index: 2, kind: output, shape index: {}]
  %s3 = sld [smem:[#allocation0]]
  $region22: #{_bayes_forward_impl.1} parent=0
    _
  %s5 = ssub.s32 1, %s3
  %s6 = scalar_select 0, %s5, %s3
  $region1: #{_bayes_forward_impl.1} parent=0
    #allocation2 [shape = 'u8[512]{0}', space=smem, size = 0x200, scoped, tag = 'input window, operand 0, single buffered']
    #allocation3 [shape = 's32[1]{0}', space=sflag, size = 0x4, scoped, tag = 'scoped memory for _bayes_forward_impl.1']
    %7 = vsyncpa [#allocation3], 0
    // Predicated region
    $region2: #{_bayes_forward_impl.1} parent=1 // pred_check
      _
    $region3: #{_bayes_forward_impl.1} parent=1 // pred_check_branch
      %9 = sbr.rel (0) target = $region5
    $region4: #{_bayes_forward_impl.1} parent=1 // pred_region
      %11 = vsyncadd [#allocation3], 0
      %s13 = sshll.u32 %s0, 4
      %s14 = int_to_ptr.vmem [resolvable:$true] %s13
      %16 = dma.vmem_to_smem %s14, 16, [#allocation2], [#allocation3]
    $region5: #{_bayes_forward_impl.1} parent=1 // pred_fallthru
      _
    // Predicated region
    $region6: #{_bayes_forward_impl.1} parent=1 // pred_check
      _
    $region7: #{_bayes_forward_impl.1} parent=1 // pred_check_branch
      %18 = sbr.rel (0) target = $region9
    $region8: #{_bayes_forward_impl.1} parent=1 // pred_region
      _
    $region9: #{_bayes_forward_impl.1} parent=1 // pred_fallthru
      _
    // Predicated region
    $region10: #{_bayes_forward_impl.1} parent=1 // pred_check
      _
    $region11: #{_bayes_forward_impl.1} parent=1 // pred_check_branch
      %20 = sbr.rel (0) target = $region13
    $region12: #{_bayes_forward_impl.1} parent=1 // pred_region
      %22 = dma.done [#allocation3], 16
    $region13: #{_bayes_forward_impl.1} parent=1 // pred_fallthru
      _
    %23 = sfence
    %s24 = sld [smem:[#allocation2]]
    %s25 = sld [smem:[#allocation2 + $0x1]]
    %s26 = sld [smem:[#allocation2 + $0x2]]
    %s27 = sld [smem:[#allocation2 + $0x3]]
    %s28 = sld [smem:[#allocation2 + $0x4]]
    %s29 = sld [smem:[#allocation2 + $0x5]]
    %s30 = sld [smem:[#allocation2 + $0x6]]
    %s31 = sld [smem:[#allocation2 + $0x7]]
    %s32 = sld [smem:[#allocation2 + $0x8]]
    %s33 = sld [smem:[#allocation2 + $0x9]]
    %s34 = sld [smem:[#allocation2 + $0xa]]
    %s35 = sld [smem:[#allocation2 + $0xb]]
    %s36 = sld [smem:[#allocation2 + $0xc]]
    %s37 = sld [smem:[#allocation2 + $0xd]]
    %s38 = sld [smem:[#allocation2 + $0xe]]
    %s39 = sld [smem:[#allocation2 + $0xf]]
    %s40 = sld [smem:[#allocation2 + $0x10]]
    %s41 = sld [smem:[#allocation2 + $0x11]]
    %s42 = smul.u32 0, 4
    %s43 = smul.addr %s42, 8
    %s44 = scalar_lea.vmem %s1, %s43
    %v45 = vld [vmem:[%s44] sm:$0xff]
    %v46 = vld [vmem:[%s44 + $0x8] sm:$0xff]
    %v47 = vld [vmem:[%s44 + $0x10] sm:$0xff]
    %v48 = vld [vmem:[%s44 + $0x18] sm:$0xff]
    %s49 = sadd.s32 %s42, 4
    %s50 = smul.addr %s49, 8
    %s51 = scalar_lea.vmem %s1, %s50
    %v52 = vld [vmem:[%s51] sm:$0xff]
    %v53 = vld [vmem:[%s51 + $0x8] sm:$0xff]
    %v54 = vld [vmem:[%s51 + $0x10] sm:$0xff]
    %v55 = vld [vmem:[%s51 + $0x18] sm:$0xff]
    %v56 = vstv %s24
    %v57 = vmul.f32 %v56, %v45
    %v58 = vmul.f32 %v56, %v46
    %v59 = vmul.f32 %v56, %v47
    %v60 = vmul.f32 %v56, %v48
    %v61 = vstv %s25
    %v62 = vmul.f32 %v61, %v52
    %v63 = vmul.f32 %v61, %v53
    %v64 = vmul.f32 %v61, %v54
    %v65 = vmul.f32 %v61, %v55
    %v66 = vadd.f32 %v57, %v62
    %v67 = vadd.f32 %v58, %v63
    %v68 = vadd.f32 %v59, %v64
    %v69 = vadd.f32 %v60, %v65
    %v70 = vstv %s28
    %v71 = vadd.f32 %v66, %v70
    %v72 = vadd.f32 %v67, %v70
    %v73 = vadd.f32 %v68, %v70
    %v74 = vadd.f32 %v69, %v70
    %v75 = vmax.f32 %v71, 0.0
    %v76 = vmax.f32 %v72, 0.0
    %v77 = vmax.f32 %v73, 0.0
    %v78 = vmax.f32 %v74, 0.0
    %v79 = vstv %s26
    %v80 = vmul.f32 %v79, %v45
    %v81 = vmul.f32 %v79, %v46
    %v82 = vmul.f32 %v79, %v47
    %v83 = vmul.f32 %v79, %v48
    %v84 = vstv %s27
    %v85 = vmul.f32 %v84, %v52
    %v86 = vmul.f32 %v84, %v53
    %v87 = vmul.f32 %v84, %v54
    %v88 = vmul.f32 %v84, %v55
    %v89 = vadd.f32 %v80, %v85
    %v90 = vadd.f32 %v81, %v86
    %v91 = vadd.f32 %v82, %v87
    %v92 = vadd.f32 %v83, %v88
    %v93 = vstv %s29
    %v94 = vadd.f32 %v89, %v93
    %v95 = vadd.f32 %v90, %v93
    %v96 = vadd.f32 %v91, %v93
    %v97 = vadd.f32 %v92, %v93
    %v98 = vmax.f32 %v94, 0.0
    %v99 = vmax.f32 %v95, 0.0
    %v100 = vmax.f32 %v96, 0.0
    %v101 = vmax.f32 %v97, 0.0
    %v102 = vstv %s30
    %v103 = vmul.f32 %v102, %v75
    %v104 = vmul.f32 %v102, %v76
    %v105 = vmul.f32 %v102, %v77
    %v106 = vmul.f32 %v102, %v78
    %v107 = vstv %s31
    %v108 = vmul.f32 %v107, %v98
    %v109 = vmul.f32 %v107, %v99
    %v110 = vmul.f32 %v107, %v100
    %v111 = vmul.f32 %v107, %v101
    %v112 = vadd.f32 %v103, %v108
    %v113 = vadd.f32 %v104, %v109
    %v114 = vadd.f32 %v105, %v110
    %v115 = vadd.f32 %v106, %v111
    %v116 = vstv %s34
    %v117 = vadd.f32 %v112, %v116
    %v118 = vadd.f32 %v113, %v116
    %v119 = vadd.f32 %v114, %v116
    %v120 = vadd.f32 %v115, %v116
    %v121 = vmax.f32 %v117, 0.0
    %v122 = vmax.f32 %v118, 0.0
    %v123 = vmax.f32 %v119, 0.0
    %v124 = vmax.f32 %v120, 0.0
    %v125 = vstv %s32
    %v126 = vmul.f32 %v125, %v75
    %v127 = vmul.f32 %v125, %v76
    %v128 = vmul.f32 %v125, %v77
    %v129 = vmul.f32 %v125, %v78
    %v130 = vstv %s33
    %v131 = vmul.f32 %v130, %v98
    %v132 = vmul.f32 %v130, %v99
    %v133 = vmul.f32 %v130, %v100
    %v134 = vmul.f32 %v130, %v101
    %v135 = vadd.f32 %v126, %v131
    %v136 = vadd.f32 %v127, %v132
    %v137 = vadd.f32 %v128, %v133
    %v138 = vadd.f32 %v129, %v134
    %v139 = vstv %s35
    %v140 = vadd.f32 %v135, %v139
    %v141 = vadd.f32 %v136, %v139
    %v142 = vadd.f32 %v137, %v139
    %v143 = vadd.f32 %v138, %v139
    %v144 = vmax.f32 %v140, 0.0
    %v145 = vmax.f32 %v141, 0.0
    %v146 = vmax.f32 %v142, 0.0
    %v147 = vmax.f32 %v143, 0.0
    %v148 = vstv %s36
    %v149 = vmul.f32 %v148, %v121
    %v150 = vmul.f32 %v148, %v122
    %v151 = vmul.f32 %v148, %v123
    %v152 = vmul.f32 %v148, %v124
    %v153 = vstv %s37
    %v154 = vmul.f32 %v153, %v144
    %v155 = vmul.f32 %v153, %v145
    %v156 = vmul.f32 %v153, %v146
    %v157 = vmul.f32 %v153, %v147
    %v158 = vadd.f32 %v149, %v154
    %v159 = vadd.f32 %v150, %v155
    %v160 = vadd.f32 %v151, %v156
    %v161 = vadd.f32 %v152, %v157
    %v162 = vstv %s40
    %v163 = vadd.f32 %v158, %v162
    %v164 = vadd.f32 %v159, %v162
    %v165 = vadd.f32 %v160, %v162
    %v166 = vadd.f32 %v161, %v162
    %v167 = vstv %s38
    %v168 = vmul.f32 %v167, %v121
    %v169 = vmul.f32 %v167, %v122
    %v170 = vmul.f32 %v167, %v123
    %v171 = vmul.f32 %v167, %v124
    %v172 = vstv %s39
    %v173 = vmul.f32 %v172, %v144
    %v174 = vmul.f32 %v172, %v145
    %v175 = vmul.f32 %v172, %v146
    %v176 = vmul.f32 %v172, %v147
    %v177 = vadd.f32 %v168, %v173
    %v178 = vadd.f32 %v169, %v174
    %v179 = vadd.f32 %v170, %v175
    %v180 = vadd.f32 %v171, %v176
    %v181 = vstv %s41
    %v182 = vadd.f32 %v177, %v181
    %v183 = vadd.f32 %v178, %v181
    %v184 = vadd.f32 %v179, %v181
    %v185 = vadd.f32 %v180, %v181
    %v186 = vmax.f32 %v163, %v182
    %v187 = vmax.f32 %v164, %v183
    %v188 = vmax.f32 %v165, %v184
    %v189 = vmax.f32 %v166, %v185
    %v190 = vsub.f32 %v163, %v182
    %v191 = vsub.f32 %v164, %v183
    %v192 = vsub.f32 %v165, %v184
    %v193 = vsub.f32 %v166, %v185
    %v194 = vand.u32 2147483647, %v190
    %v195 = vand.u32 2147483647, %v191
    %v196 = vand.u32 2147483647, %v192
    %v197 = vand.u32 2147483647, %v193
    %v198 = vsub.f32 0.0, %v194
    %v199 = vsub.f32 0.0, %v195
    %v200 = vsub.f32 0.0, %v196
    %v201 = vsub.f32 0.0, %v197
    %v202 = vmul.f32 %v198, 1.442695
    %v203 = vpow.pop %v202
    %v204 = vmul.f32 %v199, 1.442695
    %v205 = vpow.pop %v204
    %v206 = vmul.f32 %v200, 1.442695
    %v207 = vpow.pop %v206
    %v208 = vmul.f32 %v201, 1.442695
    %v209 = vpow.pop %v208
    %v210 = vadd.f32 %v203, 1.0
    %v211 = vadd.f32 %v205, 1.0
    %v212 = vadd.f32 %v207, 1.0
    %v213 = vadd.f32 %v209, 1.0
    %v214 = vlog2.pop %v210
    %v215 = vmul.f32 %v214, 0.6931472
    %v216 = vlog2.pop %v211
    %v217 = vmul.f32 %v216, 0.6931472
    %v218 = vlog2.pop %v212
    %v219 = vmul.f32 %v218, 0.6931472
    %v220 = vlog2.pop %v213
    %v221 = vmul.f32 %v220, 0.6931472
    %v222 = vadd.f32 %v186, %v215
    %v223 = vadd.f32 %v187, %v217
    %v224 = vadd.f32 %v188, %v219
    %v225 = vadd.f32 %v189, %v221
    %v226 = vsub.f32 %v163, %v222
    %v227 = vsub.f32 %v164, %v223
    %v228 = vsub.f32 %v165, %v224
    %v229 = vsub.f32 %v166, %v225
    %s230 = smul.addr %s42, 8
    %s231 = scalar_lea.vmem %s2, %s230
    %232 = vst [vmem:[%s231] sm:$0xff] %v226
    %233 = vst [vmem:[%s231 + $0x8] sm:$0xff] %v227
    %234 = vst [vmem:[%s231 + $0x10] sm:$0xff] %v228
    %235 = vst [vmem:[%s231 + $0x18] sm:$0xff] %v229
    %v236 = vsub.f32 %v182, %v222
    %v237 = vsub.f32 %v183, %v223
    %v238 = vsub.f32 %v184, %v224
    %v239 = vsub.f32 %v185, %v225
    %s240 = smul.addr %s49, 8
    %s241 = scalar_lea.vmem %s2, %s240
    %242 = vst [vmem:[%s241] sm:$0xff] %v236
    %243 = vst [vmem:[%s241 + $0x8] sm:$0xff] %v237
    %244 = vst [vmem:[%s241 + $0x10] sm:$0xff] %v238
    %245 = vst [vmem:[%s241 + $0x18] sm:$0xff] %v239
    // Predicated region
    $region14: #{_bayes_forward_impl.1} parent=1 // pred_check
      _
    $region15: #{_bayes_forward_impl.1} parent=1 // pred_check_branch
      %247 = sbr.rel (0) target = $region17
    $region16: #{_bayes_forward_impl.1} parent=1 // pred_region
      _
    $region17: #{_bayes_forward_impl.1} parent=1 // pred_fallthru
      _
    // Predicated region
    $region18: #{_bayes_forward_impl.1} parent=1 // pred_check
      _
    $region19: #{_bayes_forward_impl.1} parent=1 // pred_check_branch
      %249 = sbr.rel (0) target = $region21
    $region20: #{_bayes_forward_impl.1} parent=1 // pred_region
      _
    $region21: #{_bayes_forward_impl.1} parent=1 // pred_fallthru
      _
    %250 = vsyncpa [#allocation3], 1

</llo_original>
